<compile_context>
chip_gen: v7x
topology: tpu7x:2x2x1
jax: 0.10.0
libtpu: 0.0.40
codegen_flags: <defaults>
</compile_context>

<pallas_src>
import functools

import jax
import jax.numpy as jnp
from jax import lax
from jax.experimental import pallas as pl
from jax.experimental.pallas import tpu as pltpu


# ------------------------------ Pallas kernel --------------------------------
def _spatial_attention_kernel(w_ref, x_ref, o_ref, *, k, pad, H, W):
    """One grid step == one batch element.

    w_ref : (2*k^3,)        SMEM conv weights, (c, kd, kh, kw) order (prefetched)
    x_ref : (1, C, D, H*W)  VMEM input block (lane-dense spatial layout)
    o_ref : (1, D, H*W)     VMEM output block
    """
    HW = H * W
    xb = x_ref[0].astype(jnp.float32)            # (C, D, HW)
    avg = jnp.mean(xb, axis=0)                   # channel mean -> (D, HW)
    mx = jnp.max(xb, axis=0)                     # channel max  -> (D, HW)
    D = avg.shape[0]

    # Zero-padded flat planes, built in vregs (no HBM / scratch traffic).
    # LP = max |lane shift| of any tap = pad*W + pad, so every shifted read that
    # falls off the top/bottom (d) or front/back (h) of the volume lands in a
    # zero column; only the left/right (w) row-wrap needs a mask.
    LP = pad * W + pad
    zlane = jnp.zeros((D, LP), jnp.float32)
    zrow = jnp.zeros((pad, HW + 2 * LP), jnp.float32)

    def pad_plane(p):                            # (D, HW) -> (D+2p, HW+2*LP)
        p = jnp.concatenate([zlane, p, zlane], axis=1)
        return jnp.concatenate([zrow, p, zrow], axis=0)

    avg_p = pad_plane(avg)
    mx_p = pad_plane(mx)

    # W-row-wrap masks: one per kw offset, hoisted out of the tap loop.
    col = lax.broadcasted_iota(jnp.int32, (1, HW), 1) % W
    masks = {dw: jnp.logical_and(col + dw >= 0, col + dw < W)
             for dw in range(-pad, pad + 1)}

    kcube = k * k * k
    acc = jnp.zeros((D, HW), jnp.float32)
    # Shift-and-accumulate conv: 2*k^3 scalar-broadcast FMAs on dense lanes,
    # organized as 2*k independent accumulator chains for VALU ILP.
    # (For k=7, switch the kd loop to lax.fori_loop instead of full unroll.)
    for kw in range(k):
        dw = kw - pad
        pa = jnp.zeros((D, HW), jnp.float32)     # avg-plane partial (indep. chain)
        pm = jnp.zeros((D, HW), jnp.float32)     # max-plane partial (indep. chain)
        for kd in range(k):
            for kh in range(k):
                s = LP + (kh - pad) * W + dw     # static lane offset of this tap
                tap = (kd * k + kh) * k + kw
                pa = pa + w_ref[tap] * avg_p[kd:kd + D, s:s + HW]
                pm = pm + w_ref[kcube + tap] * mx_p[kd:kd + D, s:s + HW]
        acc = acc + jnp.where(masks[dw], pa + pm, 0.0)

    # Sigmoid epilogue (exp goes to the EUP slot) + one dense-ish store per row.
    o_ref[0] = jax.nn.sigmoid(acc).astype(o_ref.dtype)


# -------------------------------- wrapper -------------------------------------
def spatial_attention(x, weight, *, kernel_size=3):
    """SpatialAttention forward.

    x:      (N, C, D, H, W)
    weight: (1, 2, k, k, k)   PyTorch Conv3d weight (bias-free)
    returns (N, 1, D, H, W)
    """
    assert kernel_size in (3, 7)
    pad = 3 if kernel_size == 7 else 1
    N, C, D, H, W = x.shape
    assert weight.shape == (1, 2, kernel_size, kernel_size, kernel_size)

    HW = H * W
    # Free, contiguous metadata reshapes: spatial (H, W) folded into the lane axis.
    x_flat = x.reshape(N, C, D, HW)
    w_flat = weight.reshape(-1).astype(jnp.float32)   # (c, kd, kh, kw) order

    kern = functools.partial(_spatial_attention_kernel,
                             k=kernel_size, pad=pad, H=H, W=W)

    out = pl.pallas_call(
        kern,
        out_shape=jax.ShapeDtypeStruct((N, D, HW), x.dtype),
        grid_spec=pltpu.PrefetchScalarGridSpec(
            num_scalar_prefetch=1,                       # conv weights -> SMEM once
            grid=(N,),
            in_specs=[
                pl.BlockSpec((1, C, D, HW), lambda n, w: (n, 0, 0, 0)),
            ],
            out_specs=pl.BlockSpec((1, D, HW), lambda n, w: (n, 0, 0)),
        ),
        compiler_params=pltpu.CompilerParams(
            dimension_semantics=("parallel",)),          # batch shards over TCs (v7x)
    )(w_flat, x_flat)

    # Free metadata reshape back to the PyTorch NC'DHW output layout (C'=1).
    return out.reshape(N, 1, D, H, W)


# ------------------------------- reference ------------------------------------
def _reference(x, weight, *, kernel_size=3):
    pad = 3 if kernel_size == 7 else 1
    avg = jnp.mean(x, axis=1, keepdims=True)
    mx = jnp.max(x, axis=1, keepdims=True)
    feat = jnp.concatenate([avg, mx], axis=1)
    y = lax.conv_general_dilated(
        feat, weight, window_strides=(1, 1, 1),
        padding=[(pad, pad)] * 3,
        dimension_numbers=("NCDHW", "OIDHW", "NCDHW"))
    return jax.nn.sigmoid(y)


# ---------------------------------- main ---------------------------------------
if __name__ == "__main__":
    # SpatialAttention(kernel_size=3) -> Conv3d(2, 1, 3, padding=1, bias=False)
    kernel_size = 3
    N, C, D, H, W = 2, 4, 8, 8, 8

    key = jax.random.PRNGKey(0)
    kx, kw = jax.random.split(key)
    x = jax.random.normal(kx, (N, C, D, H, W), dtype=jnp.float32)
    weight = 0.1 * jax.random.normal(
        kw, (1, 2, kernel_size, kernel_size, kernel_size), dtype=jnp.float32)

    out = spatial_attention(x, weight, kernel_size=kernel_size)
    out = jax.block_until_ready(out)

    ref = _reference(x, weight, kernel_size=kernel_size)
    assert out.shape == (N, 1, D, H, W), out.shape
    err = jnp.max(jnp.abs(out - ref))
    assert jnp.allclose(out, ref, rtol=1e-4, atol=1e-4), f"mismatch vs reference, max err {err}"

    print("KERNEL_OK")
</pallas_src>

<mosaic_0001>
module attributes {stable_mosaic.version = 11 : i64} {
  func.func @_spatial_attention_kernel(%arg0: i32, %arg1: memref<54xf32, #tpu.memory_space<smem>>, %arg2: memref<1x4x8x64xf32, #tpu.memory_space<vmem>>, %arg3: memref<1x8x64xf32, #tpu.memory_space<vmem>>) attributes {dimension_semantics = [#tpu.dimension_semantics<parallel>], iteration_bounds = array<i64: 2>, scalar_prefetch = 1 : i64, scratch_operands = 0 : i64, tpu.core_type = #tpu.core_type<tc>, window_params = [{transform_indices = @transform_0, window_bounds = array<i64: 1, 4, 8, 64>}, {transform_indices = @transform_1, window_bounds = array<i64: 1, 8, 64>}]} {
    %c0 = arith.constant 0 : index
    %c0_0 = arith.constant 0 : index
    %c0_1 = arith.constant 0 : index
    %c0_2 = arith.constant 0 : index
    %0 = vector.load %arg2[%c0, %c0_0, %c0_1, %c0_2] : memref<1x4x8x64xf32, #tpu.memory_space<vmem>>, vector<1x4x8x64xf32>
    %1 = vector.shape_cast %0 : vector<1x4x8x64xf32> to vector<4x8x64xf32>
    %cst = arith.constant dense<0.000000e+00> : vector<8x64xf32>
    %2 = vector.multi_reduction <add>, %1, %cst [0] : vector<4x8x64xf32> to vector<8x64xf32>
    %cst_3 = arith.constant 4.000000e+00 : f32
    %3 = vector.broadcast %cst_3 : f32 to vector<8x64xf32>
    %4 = arith.divf %2, %3 : vector<8x64xf32>
    %cst_4 = arith.constant dense<0xFF800000> : vector<8x64xf32>
    %5 = vector.multi_reduction <maximumf>, %1, %cst_4 [0] : vector<4x8x64xf32> to vector<8x64xf32>
    %cst_5 = arith.constant 0.000000e+00 : f32
    %6 = vector.broadcast %cst_5 : f32 to vector<8x9xf32>
    %cst_6 = arith.constant 0.000000e+00 : f32
    %7 = vector.broadcast %cst_6 : f32 to vector<1x82xf32>
    %8 = tpu.concatenate %6, %4, %6 in 1 : vector<8x9xf32>, vector<8x64xf32>, vector<8x9xf32> -> vector<8x82xf32>
    %9 = tpu.concatenate %7, %8, %7 in 0 : vector<1x82xf32>, vector<8x82xf32>, vector<1x82xf32> -> vector<10x82xf32>
    %10 = tpu.concatenate %6, %5, %6 in 1 : vector<8x9xf32>, vector<8x64xf32>, vector<8x9xf32> -> vector<8x82xf32>
    %11 = tpu.concatenate %7, %10, %7 in 0 : vector<1x82xf32>, vector<8x82xf32>, vector<1x82xf32> -> vector<10x82xf32>
    %12 = tpu.iota {dimensions = array<i32: 1>} : vector<1x64xi32>
    %c8_i32 = arith.constant 8 : i32
    %c0_i32 = arith.constant 0 : i32
    %13 = arith.cmpi eq, %c8_i32, %c0_i32 : i32
    %c1_i32 = arith.constant 1 : i32
    %14 = arith.select %13, %c1_i32, %c8_i32 : i32
    %15 = vector.broadcast %14 : i32 to vector<1x64xi32>
    %16 = arith.remsi %12, %15 : vector<1x64xi32>
    %c0_i32_7 = arith.constant 0 : i32
    %17 = vector.broadcast %c0_i32_7 : i32 to vector<1x64xi32>
    %18 = arith.cmpi ne, %16, %17 : vector<1x64xi32>
    %c0_i32_8 = arith.constant 0 : i32
    %19 = vector.broadcast %c0_i32_8 : i32 to vector<1x64xi32>
    %20 = arith.cmpi slt, %16, %19 : vector<1x64xi32>
    %c0_i32_9 = arith.constant 0 : i32
    %21 = arith.cmpi slt, %14, %c0_i32_9 : i32
    %22 = vector.broadcast %21 : i1 to vector<1x64xi1>
    %23 = vector.broadcast %22 : vector<1x64xi1> to vector<1x64xi1>
    %24 = arith.xori %20, %23 : vector<1x64xi1>
    %25 = arith.andi %24, %18 : vector<1x64xi1>
    %26 = vector.broadcast %14 : i32 to vector<1x64xi32>
    %27 = arith.addi %16, %26 : vector<1x64xi32>
    %28 = arith.select %25, %27, %16 : vector<1x64xi1>, vector<1x64xi32>
    %c-1_i32 = arith.constant -1 : i32
    %29 = vector.broadcast %c-1_i32 : i32 to vector<1x64xi32>
    %30 = arith.addi %28, %29 : vector<1x64xi32>
    %c0_i32_10 = arith.constant 0 : i32
    %31 = vector.broadcast %c0_i32_10 : i32 to vector<1x64xi32>
    %32 = arith.cmpi sge, %30, %31 : vector<1x64xi32>
    %c-1_i32_11 = arith.constant -1 : i32
    %33 = vector.broadcast %c-1_i32_11 : i32 to vector<1x64xi32>
    %34 = arith.addi %28, %33 : vector<1x64xi32>
    %c8_i32_12 = arith.constant 8 : i32
    %35 = vector.broadcast %c8_i32_12 : i32 to vector<1x64xi32>
    %36 = arith.cmpi slt, %34, %35 : vector<1x64xi32>
    %37 = arith.andi %32, %36 : vector<1x64xi1>
    %c0_i32_13 = arith.constant 0 : i32
    %38 = vector.broadcast %c0_i32_13 : i32 to vector<1x64xi32>
    %39 = arith.addi %28, %38 : vector<1x64xi32>
    %c0_i32_14 = arith.constant 0 : i32
    %40 = vector.broadcast %c0_i32_14 : i32 to vector<1x64xi32>
    %41 = arith.cmpi sge, %39, %40 : vector<1x64xi32>
    %c0_i32_15 = arith.constant 0 : i32
    %42 = vector.broadcast %c0_i32_15 : i32 to vector<1x64xi32>
    %43 = arith.addi %28, %42 : vector<1x64xi32>
    %c8_i32_16 = arith.constant 8 : i32
    %44 = vector.broadcast %c8_i32_16 : i32 to vector<1x64xi32>
    %45 = arith.cmpi slt, %43, %44 : vector<1x64xi32>
    %46 = arith.andi %41, %45 : vector<1x64xi1>
    %c1_i32_17 = arith.constant 1 : i32
    %47 = vector.broadcast %c1_i32_17 : i32 to vector<1x64xi32>
    %48 = arith.addi %28, %47 : vector<1x64xi32>
    %c0_i32_18 = arith.constant 0 : i32
    %49 = vector.broadcast %c0_i32_18 : i32 to vector<1x64xi32>
    %50 = arith.cmpi sge, %48, %49 : vector<1x64xi32>
    %c1_i32_19 = arith.constant 1 : i32
    %51 = vector.broadcast %c1_i32_19 : i32 to vector<1x64xi32>
    %52 = arith.addi %28, %51 : vector<1x64xi32>
    %c8_i32_20 = arith.constant 8 : i32
    %53 = vector.broadcast %c8_i32_20 : i32 to vector<1x64xi32>
    %54 = arith.cmpi slt, %52, %53 : vector<1x64xi32>
    %55 = arith.andi %50, %54 : vector<1x64xi1>
    %cst_21 = arith.constant 0.000000e+00 : f32
    %56 = vector.broadcast %cst_21 : f32 to vector<8x64xf32>
    %cst_22 = arith.constant 0.000000e+00 : f32
    %57 = vector.broadcast %cst_22 : f32 to vector<8x64xf32>
    %cst_23 = arith.constant 0.000000e+00 : f32
    %58 = vector.broadcast %cst_23 : f32 to vector<8x64xf32>
    %c0_24 = arith.constant 0 : index
    %59 = memref.load %arg1[%c0_24] : memref<54xf32, #tpu.memory_space<smem>>
    %60 = vector.extract_strided_slice %9 {offsets = [0, 0], sizes = [8, 64], strides = [1, 1]} : vector<10x82xf32> to vector<8x64xf32>
    %61 = vector.broadcast %59 : f32 to vector<8x64xf32>
    %62 = arith.mulf %61, %60 : vector<8x64xf32>
    %63 = arith.addf %57, %62 : vector<8x64xf32>
    %c27 = arith.constant 27 : index
    %64 = memref.load %arg1[%c27] : memref<54xf32, #tpu.memory_space<smem>>
    %65 = vector.extract_strided_slice %11 {offsets = [0, 0], sizes = [8, 64], strides = [1, 1]} : vector<10x82xf32> to vector<8x64xf32>
    %66 = vector.broadcast %64 : f32 to vector<8x64xf32>
    %67 = arith.mulf %66, %65 : vector<8x64xf32>
    %68 = arith.addf %58, %67 : vector<8x64xf32>
    %c3 = arith.constant 3 : index
    %69 = memref.load %arg1[%c3] : memref<54xf32, #tpu.memory_space<smem>>
    %70 = vector.extract_strided_slice %9 {offsets = [0, 8], sizes = [8, 64], strides = [1, 1]} : vector<10x82xf32> to vector<8x64xf32>
    %71 = vector.broadcast %69 : f32 to vector<8x64xf32>
    %72 = arith.mulf %71, %70 : vector<8x64xf32>
    %73 = arith.addf %63, %72 : vector<8x64xf32>
    %c30 = arith.constant 30 : index
    %74 = memref.load %arg1[%c30] : memref<54xf32, #tpu.memory_space<smem>>
    %75 = vector.extract_strided_slice %11 {offsets = [0, 8], sizes = [8, 64], strides = [1, 1]} : vector<10x82xf32> to vector<8x64xf32>
    %76 = vector.broadcast %74 : f32 to vector<8x64xf32>
    %77 = arith.mulf %76, %75 : vector<8x64xf32>
    %78 = arith.addf %68, %77 : vector<8x64xf32>
    %c6 = arith.constant 6 : index
    %79 = memref.load %arg1[%c6] : memref<54xf32, #tpu.memory_space<smem>>
    %80 = vector.extract_strided_slice %9 {offsets = [0, 16], sizes = [8, 64], strides = [1, 1]} : vector<10x82xf32> to vector<8x64xf32>
    %81 = vector.broadcast %79 : f32 to vector<8x64xf32>
    %82 = arith.mulf %81, %80 : vector<8x64xf32>
    %83 = arith.addf %73, %82 : vector<8x64xf32>
    %c33 = arith.constant 33 : index
    %84 = memref.load %arg1[%c33] : memref<54xf32, #tpu.memory_space<smem>>
    %85 = vector.extract_strided_slice %11 {offsets = [0, 16], sizes = [8, 64], strides = [1, 1]} : vector<10x82xf32> to vector<8x64xf32>
    %86 = vector.broadcast %84 : f32 to vector<8x64xf32>
    %87 = arith.mulf %86, %85 : vector<8x64xf32>
    %88 = arith.addf %78, %87 : vector<8x64xf32>
    %c9 = arith.constant 9 : index
    %89 = memref.load %arg1[%c9] : memref<54xf32, #tpu.memory_space<smem>>
    %90 = vector.extract_strided_slice %9 {offsets = [1, 0], sizes = [8, 64], strides = [1, 1]} : vector<10x82xf32> to vector<8x64xf32>
    %91 = vector.broadcast %89 : f32 to vector<8x64xf32>
    %92 = arith.mulf %91, %90 : vector<8x64xf32>
    %93 = arith.addf %83, %92 : vector<8x64xf32>
    %c36 = arith.constant 36 : index
    %94 = memref.load %arg1[%c36] : memref<54xf32, #tpu.memory_space<smem>>
    %95 = vector.extract_strided_slice %11 {offsets = [1, 0], sizes = [8, 64], strides = [1, 1]} : vector<10x82xf32> to vector<8x64xf32>
    %96 = vector.broadcast %94 : f32 to vector<8x64xf32>
    %97 = arith.mulf %96, %95 : vector<8x64xf32>
    %98 = arith.addf %88, %97 : vector<8x64xf32>
    %c12 = arith.constant 12 : index
    %99 = memref.load %arg1[%c12] : memref<54xf32, #tpu.memory_space<smem>>
    %100 = vector.extract_strided_slice %9 {offsets = [1, 8], sizes = [8, 64], strides = [1, 1]} : vector<10x82xf32> to vector<8x64xf32>
    %101 = vector.broadcast %99 : f32 to vector<8x64xf32>
    %102 = arith.mulf %101, %100 : vector<8x64xf32>
    %103 = arith.addf %93, %102 : vector<8x64xf32>
    %c39 = arith.constant 39 : index
    %104 = memref.load %arg1[%c39] : memref<54xf32, #tpu.memory_space<smem>>
    %105 = vector.extract_strided_slice %11 {offsets = [1, 8], sizes = [8, 64], strides = [1, 1]} : vector<10x82xf32> to vector<8x64xf32>
    %106 = vector.broadcast %104 : f32 to vector<8x64xf32>
    %107 = arith.mulf %106, %105 : vector<8x64xf32>
    %108 = arith.addf %98, %107 : vector<8x64xf32>
    %c15 = arith.constant 15 : index
    %109 = memref.load %arg1[%c15] : memref<54xf32, #tpu.memory_space<smem>>
    %110 = vector.extract_strided_slice %9 {offsets = [1, 16], sizes = [8, 64], strides = [1, 1]} : vector<10x82xf32> to vector<8x64xf32>
    %111 = vector.broadcast %109 : f32 to vector<8x64xf32>
    %112 = arith.mulf %111, %110 : vector<8x64xf32>
    %113 = arith.addf %103, %112 : vector<8x64xf32>
    %c42 = arith.constant 42 : index
    %114 = memref.load %arg1[%c42] : memref<54xf32, #tpu.memory_space<smem>>
    %115 = vector.extract_strided_slice %11 {offsets = [1, 16], sizes = [8, 64], strides = [1, 1]} : vector<10x82xf32> to vector<8x64xf32>
    %116 = vector.broadcast %114 : f32 to vector<8x64xf32>
    %117 = arith.mulf %116, %115 : vector<8x64xf32>
    %118 = arith.addf %108, %117 : vector<8x64xf32>
    %c18 = arith.constant 18 : index
    %119 = memref.load %arg1[%c18] : memref<54xf32, #tpu.memory_space<smem>>
    %120 = vector.extract_strided_slice %9 {offsets = [2, 0], sizes = [8, 64], strides = [1, 1]} : vector<10x82xf32> to vector<8x64xf32>
    %121 = vector.broadcast %119 : f32 to vector<8x64xf32>
    %122 = arith.mulf %121, %120 : vector<8x64xf32>
    %123 = arith.addf %113, %122 : vector<8x64xf32>
    %c45 = arith.constant 45 : index
    %124 = memref.load %arg1[%c45] : memref<54xf32, #tpu.memory_space<smem>>
    %125 = vector.extract_strided_slice %11 {offsets = [2, 0], sizes = [8, 64], strides = [1, 1]} : vector<10x82xf32> to vector<8x64xf32>
    %126 = vector.broadcast %124 : f32 to vector<8x64xf32>
    %127 = arith.mulf %126, %125 : vector<8x64xf32>
    %128 = arith.addf %118, %127 : vector<8x64xf32>
    %c21 = arith.constant 21 : index
    %129 = memref.load %arg1[%c21] : memref<54xf32, #tpu.memory_space<smem>>
    %130 = vector.extract_strided_slice %9 {offsets = [2, 8], sizes = [8, 64], strides = [1, 1]} : vector<10x82xf32> to vector<8x64xf32>
    %131 = vector.broadcast %129 : f32 to vector<8x64xf32>
    %132 = arith.mulf %131, %130 : vector<8x64xf32>
    %133 = arith.addf %123, %132 : vector<8x64xf32>
    %c48 = arith.constant 48 : index
    %134 = memref.load %arg1[%c48] : memref<54xf32, #tpu.memory_space<smem>>
    %135 = vector.extract_strided_slice %11 {offsets = [2, 8], sizes = [8, 64], strides = [1, 1]} : vector<10x82xf32> to vector<8x64xf32>
    %136 = vector.broadcast %134 : f32 to vector<8x64xf32>
    %137 = arith.mulf %136, %135 : vector<8x64xf32>
    %138 = arith.addf %128, %137 : vector<8x64xf32>
    %c24 = arith.constant 24 : index
    %139 = memref.load %arg1[%c24] : memref<54xf32, #tpu.memory_space<smem>>
    %140 = vector.extract_strided_slice %9 {offsets = [2, 16], sizes = [8, 64], strides = [1, 1]} : vector<10x82xf32> to vector<8x64xf32>
    %141 = vector.broadcast %139 : f32 to vector<8x64xf32>
    %142 = arith.mulf %141, %140 : vector<8x64xf32>
    %143 = arith.addf %133, %142 : vector<8x64xf32>
    %c51 = arith.constant 51 : index
    %144 = memref.load %arg1[%c51] : memref<54xf32, #tpu.memory_space<smem>>
    %145 = vector.extract_strided_slice %11 {offsets = [2, 16], sizes = [8, 64], strides = [1, 1]} : vector<10x82xf32> to vector<8x64xf32>
    %146 = vector.broadcast %144 : f32 to vector<8x64xf32>
    %147 = arith.mulf %146, %145 : vector<8x64xf32>
    %148 = arith.addf %138, %147 : vector<8x64xf32>
    %149 = arith.addf %143, %148 : vector<8x64xf32>
    %cst_25 = arith.constant 0.000000e+00 : f32
    %150 = vector.shape_cast %37 : vector<1x64xi1> to vector<1x64xi1>
    %151 = vector.broadcast %150 : vector<1x64xi1> to vector<8x64xi1>
    %152 = vector.broadcast %cst_25 : f32 to vector<8x64xf32>
    %153 = arith.select %151, %149, %152 : vector<8x64xi1>, vector<8x64xf32>
    %154 = arith.addf %56, %153 : vector<8x64xf32>
    %cst_26 = arith.constant 0.000000e+00 : f32
    %155 = vector.broadcast %cst_26 : f32 to vector<8x64xf32>
    %cst_27 = arith.constant 0.000000e+00 : f32
    %156 = vector.broadcast %cst_27 : f32 to vector<8x64xf32>
    %c1 = arith.constant 1 : index
    %157 = memref.load %arg1[%c1] : memref<54xf32, #tpu.memory_space<smem>>
    %158 = vector.extract_strided_slice %9 {offsets = [0, 1], sizes = [8, 64], strides = [1, 1]} : vector<10x82xf32> to vector<8x64xf32>
    %159 = vector.broadcast %157 : f32 to vector<8x64xf32>
    %160 = arith.mulf %159, %158 : vector<8x64xf32>
    %161 = arith.addf %155, %160 : vector<8x64xf32>
    %c28 = arith.constant 28 : index
    %162 = memref.load %arg1[%c28] : memref<54xf32, #tpu.memory_space<smem>>
    %163 = vector.extract_strided_slice %11 {offsets = [0, 1], sizes = [8, 64], strides = [1, 1]} : vector<10x82xf32> to vector<8x64xf32>
    %164 = vector.broadcast %162 : f32 to vector<8x64xf32>
    %165 = arith.mulf %164, %163 : vector<8x64xf32>
    %166 = arith.addf %156, %165 : vector<8x64xf32>
    %c4 = arith.constant 4 : index
    %167 = memref.load %arg1[%c4] : memref<54xf32, #tpu.memory_space<smem>>
    %168 = vector.extract_strided_slice %9 {offsets = [0, 9], sizes = [8, 64], strides = [1, 1]} : vector<10x82xf32> to vector<8x64xf32>
    %169 = vector.broadcast %167 : f32 to vector<8x64xf32>
    %170 = arith.mulf %169, %168 : vector<8x64xf32>
    %171 = arith.addf %161, %170 : vector<8x64xf32>
    %c31 = arith.constant 31 : index
    %172 = memref.load %arg1[%c31] : memref<54xf32, #tpu.memory_space<smem>>
    %173 = vector.extract_strided_slice %11 {offsets = [0, 9], sizes = [8, 64], strides = [1, 1]} : vector<10x82xf32> to vector<8x64xf32>
    %174 = vector.broadcast %172 : f32 to vector<8x64xf32>
    %175 = arith.mulf %174, %173 : vector<8x64xf32>
    %176 = arith.addf %166, %175 : vector<8x64xf32>
    %c7 = arith.constant 7 : index
    %177 = memref.load %arg1[%c7] : memref<54xf32, #tpu.memory_space<smem>>
    %178 = vector.extract_strided_slice %9 {offsets = [0, 17], sizes = [8, 64], strides = [1, 1]} : vector<10x82xf32> to vector<8x64xf32>
    %179 = vector.broadcast %177 : f32 to vector<8x64xf32>
    %180 = arith.mulf %179, %178 : vector<8x64xf32>
    %181 = arith.addf %171, %180 : vector<8x64xf32>
    %c34 = arith.constant 34 : index
    %182 = memref.load %arg1[%c34] : memref<54xf32, #tpu.memory_space<smem>>
    %183 = vector.extract_strided_slice %11 {offsets = [0, 17], sizes = [8, 64], strides = [1, 1]} : vector<10x82xf32> to vector<8x64xf32>
    %184 = vector.broadcast %182 : f32 to vector<8x64xf32>
    %185 = arith.mulf %184, %183 : vector<8x64xf32>
    %186 = arith.addf %176, %185 : vector<8x64xf32>
    %c10 = arith.constant 10 : index
    %187 = memref.load %arg1[%c10] : memref<54xf32, #tpu.memory_space<smem>>
    %188 = vector.extract_strided_slice %9 {offsets = [1, 1], sizes = [8, 64], strides = [1, 1]} : vector<10x82xf32> to vector<8x64xf32>
    %189 = vector.broadcast %187 : f32 to vector<8x64xf32>
    %190 = arith.mulf %189, %188 : vector<8x64xf32>
    %191 = arith.addf %181, %190 : vector<8x64xf32>
    %c37 = arith.constant 37 : index
    %192 = memref.load %arg1[%c37] : memref<54xf32, #tpu.memory_space<smem>>
    %193 = vector.extract_strided_slice %11 {offsets = [1, 1], sizes = [8, 64], strides = [1, 1]} : vector<10x82xf32> to vector<8x64xf32>
    %194 = vector.broadcast %192 : f32 to vector<8x64xf32>
    %195 = arith.mulf %194, %193 : vector<8x64xf32>
    %196 = arith.addf %186, %195 : vector<8x64xf32>
    %c13 = arith.constant 13 : index
    %197 = memref.load %arg1[%c13] : memref<54xf32, #tpu.memory_space<smem>>
    %198 = vector.extract_strided_slice %9 {offsets = [1, 9], sizes = [8, 64], strides = [1, 1]} : vector<10x82xf32> to vector<8x64xf32>
    %199 = vector.broadcast %197 : f32 to vector<8x64xf32>
    %200 = arith.mulf %199, %198 : vector<8x64xf32>
    %201 = arith.addf %191, %200 : vector<8x64xf32>
    %c40 = arith.constant 40 : index
    %202 = memref.load %arg1[%c40] : memref<54xf32, #tpu.memory_space<smem>>
    %203 = vector.extract_strided_slice %11 {offsets = [1, 9], sizes = [8, 64], strides = [1, 1]} : vector<10x82xf32> to vector<8x64xf32>
    %204 = vector.broadcast %202 : f32 to vector<8x64xf32>
    %205 = arith.mulf %204, %203 : vector<8x64xf32>
    %206 = arith.addf %196, %205 : vector<8x64xf32>
    %c16 = arith.constant 16 : index
    %207 = memref.load %arg1[%c16] : memref<54xf32, #tpu.memory_space<smem>>
    %208 = vector.extract_strided_slice %9 {offsets = [1, 17], sizes = [8, 64], strides = [1, 1]} : vector<10x82xf32> to vector<8x64xf32>
    %209 = vector.broadcast %207 : f32 to vector<8x64xf32>
    %210 = arith.mulf %209, %208 : vector<8x64xf32>
    %211 = arith.addf %201, %210 : vector<8x64xf32>
    %c43 = arith.constant 43 : index
    %212 = memref.load %arg1[%c43] : memref<54xf32, #tpu.memory_space<smem>>
    %213 = vector.extract_strided_slice %11 {offsets = [1, 17], sizes = [8, 64], strides = [1, 1]} : vector<10x82xf32> to vector<8x64xf32>
    %214 = vector.broadcast %212 : f32 to vector<8x64xf32>
    %215 = arith.mulf %214, %213 : vector<8x64xf32>
    %216 = arith.addf %206, %215 : vector<8x64xf32>
    %c19 = arith.constant 19 : index
    %217 = memref.load %arg1[%c19] : memref<54xf32, #tpu.memory_space<smem>>
    %218 = vector.extract_strided_slice %9 {offsets = [2, 1], sizes = [8, 64], strides = [1, 1]} : vector<10x82xf32> to vector<8x64xf32>
    %219 = vector.broadcast %217 : f32 to vector<8x64xf32>
    %220 = arith.mulf %219, %218 : vector<8x64xf32>
    %221 = arith.addf %211, %220 : vector<8x64xf32>
    %c46 = arith.constant 46 : index
    %222 = memref.load %arg1[%c46] : memref<54xf32, #tpu.memory_space<smem>>
    %223 = vector.extract_strided_slice %11 {offsets = [2, 1], sizes = [8, 64], strides = [1, 1]} : vector<10x82xf32> to vector<8x64xf32>
    %224 = vector.broadcast %222 : f32 to vector<8x64xf32>
    %225 = arith.mulf %224, %223 : vector<8x64xf32>
    %226 = arith.addf %216, %225 : vector<8x64xf32>
    %c22 = arith.constant 22 : index
    %227 = memref.load %arg1[%c22] : memref<54xf32, #tpu.memory_space<smem>>
    %228 = vector.extract_strided_slice %9 {offsets = [2, 9], sizes = [8, 64], strides = [1, 1]} : vector<10x82xf32> to vector<8x64xf32>
    %229 = vector.broadcast %227 : f32 to vector<8x64xf32>
    %230 = arith.mulf %229, %228 : vector<8x64xf32>
    %231 = arith.addf %221, %230 : vector<8x64xf32>
    %c49 = arith.constant 49 : index
    %232 = memref.load %arg1[%c49] : memref<54xf32, #tpu.memory_space<smem>>
    %233 = vector.extract_strided_slice %11 {offsets = [2, 9], sizes = [8, 64], strides = [1, 1]} : vector<10x82xf32> to vector<8x64xf32>
    %234 = vector.broadcast %232 : f32 to vector<8x64xf32>
    %235 = arith.mulf %234, %233 : vector<8x64xf32>
    %236 = arith.addf %226, %235 : vector<8x64xf32>
    %c25 = arith.constant 25 : index
    %237 = memref.load %arg1[%c25] : memref<54xf32, #tpu.memory_space<smem>>
    %238 = vector.extract_strided_slice %9 {offsets = [2, 17], sizes = [8, 64], strides = [1, 1]} : vector<10x82xf32> to vector<8x64xf32>
    %239 = vector.broadcast %237 : f32 to vector<8x64xf32>
    %240 = arith.mulf %239, %238 : vector<8x64xf32>
    %241 = arith.addf %231, %240 : vector<8x64xf32>
    %c52 = arith.constant 52 : index
    %242 = memref.load %arg1[%c52] : memref<54xf32, #tpu.memory_space<smem>>
    %243 = vector.extract_strided_slice %11 {offsets = [2, 17], sizes = [8, 64], strides = [1, 1]} : vector<10x82xf32> to vector<8x64xf32>
    %244 = vector.broadcast %242 : f32 to vector<8x64xf32>
    %245 = arith.mulf %244, %243 : vector<8x64xf32>
    %246 = arith.addf %236, %245 : vector<8x64xf32>
    %247 = arith.addf %241, %246 : vector<8x64xf32>
    %cst_28 = arith.constant 0.000000e+00 : f32
    %248 = vector.shape_cast %46 : vector<1x64xi1> to vector<1x64xi1>
    %249 = vector.broadcast %248 : vector<1x64xi1> to vector<8x64xi1>
    %250 = vector.broadcast %cst_28 : f32 to vector<8x64xf32>
    %251 = arith.select %249, %247, %250 : vector<8x64xi1>, vector<8x64xf32>
    %252 = arith.addf %154, %251 : vector<8x64xf32>
    %cst_29 = arith.constant 0.000000e+00 : f32
    %253 = vector.broadcast %cst_29 : f32 to vector<8x64xf32>
    %cst_30 = arith.constant 0.000000e+00 : f32
    %254 = vector.broadcast %cst_30 : f32 to vector<8x64xf32>
    %c2 = arith.constant 2 : index
    %255 = memref.load %arg1[%c2] : memref<54xf32, #tpu.memory_space<smem>>
    %256 = vector.extract_strided_slice %9 {offsets = [0, 2], sizes = [8, 64], strides = [1, 1]} : vector<10x82xf32> to vector<8x64xf32>
    %257 = vector.broadcast %255 : f32 to vector<8x64xf32>
    %258 = arith.mulf %257, %256 : vector<8x64xf32>
    %259 = arith.addf %253, %258 : vector<8x64xf32>
    %c29 = arith.constant 29 : index
    %260 = memref.load %arg1[%c29] : memref<54xf32, #tpu.memory_space<smem>>
    %261 = vector.extract_strided_slice %11 {offsets = [0, 2], sizes = [8, 64], strides = [1, 1]} : vector<10x82xf32> to vector<8x64xf32>
    %262 = vector.broadcast %260 : f32 to vector<8x64xf32>
    %263 = arith.mulf %262, %261 : vector<8x64xf32>
    %264 = arith.addf %254, %263 : vector<8x64xf32>
    %c5 = arith.constant 5 : index
    %265 = memref.load %arg1[%c5] : memref<54xf32, #tpu.memory_space<smem>>
    %266 = vector.extract_strided_slice %9 {offsets = [0, 10], sizes = [8, 64], strides = [1, 1]} : vector<10x82xf32> to vector<8x64xf32>
    %267 = vector.broadcast %265 : f32 to vector<8x64xf32>
    %268 = arith.mulf %267, %266 : vector<8x64xf32>
    %269 = arith.addf %259, %268 : vector<8x64xf32>
    %c32 = arith.constant 32 : index
    %270 = memref.load %arg1[%c32] : memref<54xf32, #tpu.memory_space<smem>>
    %271 = vector.extract_strided_slice %11 {offsets = [0, 10], sizes = [8, 64], strides = [1, 1]} : vector<10x82xf32> to vector<8x64xf32>
    %272 = vector.broadcast %270 : f32 to vector<8x64xf32>
    %273 = arith.mulf %272, %271 : vector<8x64xf32>
    %274 = arith.addf %264, %273 : vector<8x64xf32>
    %c8 = arith.constant 8 : index
    %275 = memref.load %arg1[%c8] : memref<54xf32, #tpu.memory_space<smem>>
    %276 = vector.extract_strided_slice %9 {offsets = [0, 18], sizes = [8, 64], strides = [1, 1]} : vector<10x82xf32> to vector<8x64xf32>
    %277 = vector.broadcast %275 : f32 to vector<8x64xf32>
    %278 = arith.mulf %277, %276 : vector<8x64xf32>
    %279 = arith.addf %269, %278 : vector<8x64xf32>
    %c35 = arith.constant 35 : index
    %280 = memref.load %arg1[%c35] : memref<54xf32, #tpu.memory_space<smem>>
    %281 = vector.extract_strided_slice %11 {offsets = [0, 18], sizes = [8, 64], strides = [1, 1]} : vector<10x82xf32> to vector<8x64xf32>
    %282 = vector.broadcast %280 : f32 to vector<8x64xf32>
    %283 = arith.mulf %282, %281 : vector<8x64xf32>
    %284 = arith.addf %274, %283 : vector<8x64xf32>
    %c11 = arith.constant 11 : index
    %285 = memref.load %arg1[%c11] : memref<54xf32, #tpu.memory_space<smem>>
    %286 = vector.extract_strided_slice %9 {offsets = [1, 2], sizes = [8, 64], strides = [1, 1]} : vector<10x82xf32> to vector<8x64xf32>
    %287 = vector.broadcast %285 : f32 to vector<8x64xf32>
    %288 = arith.mulf %287, %286 : vector<8x64xf32>
    %289 = arith.addf %279, %288 : vector<8x64xf32>
    %c38 = arith.constant 38 : index
    %290 = memref.load %arg1[%c38] : memref<54xf32, #tpu.memory_space<smem>>
    %291 = vector.extract_strided_slice %11 {offsets = [1, 2], sizes = [8, 64], strides = [1, 1]} : vector<10x82xf32> to vector<8x64xf32>
    %292 = vector.broadcast %290 : f32 to vector<8x64xf32>
    %293 = arith.mulf %292, %291 : vector<8x64xf32>
    %294 = arith.addf %284, %293 : vector<8x64xf32>
    %c14 = arith.constant 14 : index
    %295 = memref.load %arg1[%c14] : memref<54xf32, #tpu.memory_space<smem>>
    %296 = vector.extract_strided_slice %9 {offsets = [1, 10], sizes = [8, 64], strides = [1, 1]} : vector<10x82xf32> to vector<8x64xf32>
    %297 = vector.broadcast %295 : f32 to vector<8x64xf32>
    %298 = arith.mulf %297, %296 : vector<8x64xf32>
    %299 = arith.addf %289, %298 : vector<8x64xf32>
    %c41 = arith.constant 41 : index
    %300 = memref.load %arg1[%c41] : memref<54xf32, #tpu.memory_space<smem>>
    %301 = vector.extract_strided_slice %11 {offsets = [1, 10], sizes = [8, 64], strides = [1, 1]} : vector<10x82xf32> to vector<8x64xf32>
    %302 = vector.broadcast %300 : f32 to vector<8x64xf32>
    %303 = arith.mulf %302, %301 : vector<8x64xf32>
    %304 = arith.addf %294, %303 : vector<8x64xf32>
    %c17 = arith.constant 17 : index
    %305 = memref.load %arg1[%c17] : memref<54xf32, #tpu.memory_space<smem>>
    %306 = vector.extract_strided_slice %9 {offsets = [1, 18], sizes = [8, 64], strides = [1, 1]} : vector<10x82xf32> to vector<8x64xf32>
    %307 = vector.broadcast %305 : f32 to vector<8x64xf32>
    %308 = arith.mulf %307, %306 : vector<8x64xf32>
    %309 = arith.addf %299, %308 : vector<8x64xf32>
    %c44 = arith.constant 44 : index
    %310 = memref.load %arg1[%c44] : memref<54xf32, #tpu.memory_space<smem>>
    %311 = vector.extract_strided_slice %11 {offsets = [1, 18], sizes = [8, 64], strides = [1, 1]} : vector<10x82xf32> to vector<8x64xf32>
    %312 = vector.broadcast %310 : f32 to vector<8x64xf32>
    %313 = arith.mulf %312, %311 : vector<8x64xf32>
    %314 = arith.addf %304, %313 : vector<8x64xf32>
    %c20 = arith.constant 20 : index
    %315 = memref.load %arg1[%c20] : memref<54xf32, #tpu.memory_space<smem>>
    %316 = vector.extract_strided_slice %9 {offsets = [2, 2], sizes = [8, 64], strides = [1, 1]} : vector<10x82xf32> to vector<8x64xf32>
    %317 = vector.broadcast %315 : f32 to vector<8x64xf32>
    %318 = arith.mulf %317, %316 : vector<8x64xf32>
    %319 = arith.addf %309, %318 : vector<8x64xf32>
    %c47 = arith.constant 47 : index
    %320 = memref.load %arg1[%c47] : memref<54xf32, #tpu.memory_space<smem>>
    %321 = vector.extract_strided_slice %11 {offsets = [2, 2], sizes = [8, 64], strides = [1, 1]} : vector<10x82xf32> to vector<8x64xf32>
    %322 = vector.broadcast %320 : f32 to vector<8x64xf32>
    %323 = arith.mulf %322, %321 : vector<8x64xf32>
    %324 = arith.addf %314, %323 : vector<8x64xf32>
    %c23 = arith.constant 23 : index
    %325 = memref.load %arg1[%c23] : memref<54xf32, #tpu.memory_space<smem>>
    %326 = vector.extract_strided_slice %9 {offsets = [2, 10], sizes = [8, 64], strides = [1, 1]} : vector<10x82xf32> to vector<8x64xf32>
    %327 = vector.broadcast %325 : f32 to vector<8x64xf32>
    %328 = arith.mulf %327, %326 : vector<8x64xf32>
    %329 = arith.addf %319, %328 : vector<8x64xf32>
    %c50 = arith.constant 50 : index
    %330 = memref.load %arg1[%c50] : memref<54xf32, #tpu.memory_space<smem>>
    %331 = vector.extract_strided_slice %11 {offsets = [2, 10], sizes = [8, 64], strides = [1, 1]} : vector<10x82xf32> to vector<8x64xf32>
    %332 = vector.broadcast %330 : f32 to vector<8x64xf32>
    %333 = arith.mulf %332, %331 : vector<8x64xf32>
    %334 = arith.addf %324, %333 : vector<8x64xf32>
    %c26 = arith.constant 26 : index
    %335 = memref.load %arg1[%c26] : memref<54xf32, #tpu.memory_space<smem>>
    %336 = vector.extract_strided_slice %9 {offsets = [2, 18], sizes = [8, 64], strides = [1, 1]} : vector<10x82xf32> to vector<8x64xf32>
    %337 = vector.broadcast %335 : f32 to vector<8x64xf32>
    %338 = arith.mulf %337, %336 : vector<8x64xf32>
    %339 = arith.addf %329, %338 : vector<8x64xf32>
    %c53 = arith.constant 53 : index
    %340 = memref.load %arg1[%c53] : memref<54xf32, #tpu.memory_space<smem>>
    %341 = vector.extract_strided_slice %11 {offsets = [2, 18], sizes = [8, 64], strides = [1, 1]} : vector<10x82xf32> to vector<8x64xf32>
    %342 = vector.broadcast %340 : f32 to vector<8x64xf32>
    %343 = arith.mulf %342, %341 : vector<8x64xf32>
    %344 = arith.addf %334, %343 : vector<8x64xf32>
    %345 = arith.addf %339, %344 : vector<8x64xf32>
    %cst_31 = arith.constant 0.000000e+00 : f32
    %346 = vector.shape_cast %55 : vector<1x64xi1> to vector<1x64xi1>
    %347 = vector.broadcast %346 : vector<1x64xi1> to vector<8x64xi1>
    %348 = vector.broadcast %cst_31 : f32 to vector<8x64xf32>
    %349 = arith.select %347, %345, %348 : vector<8x64xi1>, vector<8x64xf32>
    %350 = arith.addf %252, %349 : vector<8x64xf32>
    %351 = arith.negf %350 : vector<8x64xf32>
    %352 = math.exp %351 : vector<8x64xf32>
    %cst_32 = arith.constant 1.000000e+00 : f32
    %353 = vector.broadcast %cst_32 : f32 to vector<8x64xf32>
    %354 = arith.addf %353, %352 : vector<8x64xf32>
    %355 = arith.divf %353, %354 : vector<8x64xf32>
    %c0_33 = arith.constant 0 : index
    %c0_34 = arith.constant 0 : index
    %c0_35 = arith.constant 0 : index
    %356 = vector.load %arg3[%c0_33, %c0_34, %c0_35] : memref<1x8x64xf32, #tpu.memory_space<vmem>>, vector<1x8x64xf32>
    %357 = vector.shape_cast %356 : vector<1x8x64xf32> to vector<8x64xf32>
    %358 = vector.shape_cast %355 : vector<8x64xf32> to vector<1x8x64xf32>
    tpu.vector_store %arg3[%c0_33, %c0_34, %c0_35], %358 {strides = array<i32>} : memref<1x8x64xf32, #tpu.memory_space<vmem>>, vector<1x8x64xf32>,
    return
  }
  func.func @transform_0(%arg0: i32, %arg1: memref<54xf32, #tpu.memory_space<smem>>) -> (i32, i32, i32, i32) {
    %c0_i32 = arith.constant 0 : i32
    %c0_i32_0 = arith.constant 0 : i32
    %c0_i32_1 = arith.constant 0 : i32
    %c0_i32_2 = arith.constant 0 : i32
    return %arg0, %c0_i32, %c0_i32_0, %c0_i32_1 : i32, i32, i32, i32
  }
  func.func @transform_1(%arg0: i32, %arg1: memref<54xf32, #tpu.memory_space<smem>>) -> (i32, i32, i32) {
    %c0_i32 = arith.constant 0 : i32
    %c0_i32_0 = arith.constant 0 : i32
    %c0_i32_1 = arith.constant 0 : i32
    return %arg0, %c0_i32, %c0_i32_0 : i32, i32, i32
  }
}

</mosaic_0001>

<llo_original>
// kernel: tpu_custom_call.1
$region0: #{tpu_custom_call.1}
  #allocation0 [shape = 'u32[]', space=smem, size = 0x4, offset = 0x4, fixed_abs, tag = 'smem constant byte address 0x4 - core index']
  #allocation1 [shape = 'u32[144,128]{1,0:T(1,128)}', space=vmem, size = 0x12000, scoped, tag = 'internal scratch']
  #allocation2 [shape = 's32[1]{0}', space=sflag, size = 0x4, scoped, tag = 'scoped memory for tpu_custom_call.1']
  #allocation3 [shape = 'u8[512]{0}', space=smem, size = 0x200, scoped, tag = 'prefetched SMEM operand 0']
  %s0 = inlined_call_operand.hbm [shape: f32[54], index: 0, kind: input, shape index: {}]
  %s1 = inlined_call_operand.hbm [shape: f32[2,4,8,64], index: 1, kind: input, shape index: {}]
  %s2 = inlined_call_operand.hbm [shape: f32[2,8,64], index: 2, kind: output, shape index: {}]
  %s3 = sld [smem:[#allocation0]]
  $region41: #{tpu_custom_call.1} parent=0
    _
  %s5 = ssub.s32 1, %s3
  %s6 = scalar_select 0, %s5, %s3
  %8 = dma.hbm_to_smem %s0, 16, [#allocation3], [#allocation2]
  %9 = dma.done [#allocation2], 16
  %10 = sfence
  $region1: #{tpu_custom_call.1} parent=0
    #allocation4 [shape = 'u8[32768]{0}', space=vmem, size = 0x8000, scoped, tag = 'input window, operand 1']
    #allocation5 [shape = 's32[2]{0}', space=sflag, size = 0x8, scoped, tag = 'scoped memory for tpu_custom_call.1']
    #allocation6 [shape = 's32[2]{0}', space=sflag, size = 0x8, scoped, tag = 'scoped memory for tpu_custom_call.1']
    #allocation7 [shape = 'u8[8192]{0}', space=vmem, size = 0x2000, scoped, tag = 'output window, operand 0']
    %11 = vsyncpa [#allocation5], 0
    %s12 = scalar_lea.sflag [#allocation5], 1
    %13 = vsyncpa %s12, 0
    %14 = vsyncpa [#allocation6], 0
    %s15 = scalar_lea.sflag [#allocation6], 1
    %16 = vsyncpa %s15, 0
    loop: start=0, step=1, limit=4
    $region2: #{tpu_custom_call.1} parent=1 // loop_pre_header
      _
    $region3: #{tpu_custom_call.1} parent=1 // loop_header
      %s18 = sphi 0, %s22
      %p19 = scmp.ge.s32.totalorder %s18, 4
      %s28 = sphi 0, %s30
      %s31 = sphi 0, %s28
      %s32 = sphi 0, %s31
      %s48 = sphi 0, %s32
      %s54 = sphi 0, %s56
      %s57 = sphi 0, %s54
      %s58 = sphi 0, %s57
      %s74 = sphi 0, %s58
    $region4: #{tpu_custom_call.1} parent=1 // loop_header_branch
      %21 = sbr.rel (%p19) target = $region8
    $region5: #{tpu_custom_call.1} parent=1 // loop_body
      %s23 = ssub.s32 %s18, 1
      %s24 = ssub.s32 %s18, 2
      %s25 = sadd.s32 %s18, 1
      %s26 = ssub.s32 %s18, %s25
      %p27 = scmp.eq.s32.totalorder %s26, 0
      %s29 = sadd.s32 %s28, 1
      %s30 = scalar_select %p27, %s28, %s29
      %p33 = pneg %p27
      %p34 = scmp.eq.s32.totalorder %s18, 1
      %p35 = por %p33, %p34
      %p36 = scmp.ne.s32.totalorder %s28, %s31
      %p37 = scmp.eq.s32.totalorder %s18, 0
      %p38 = por %p36, %p37
      %p39 = scmp.ne.s32.totalorder %s28, %s31
      %p40 = scmp.eq.s32.totalorder %s23, 1
      %p41 = por %p39, %p40
      %p42 = scmp.ne.s32.totalorder %s31, %s32
      %p43 = scmp.eq.s32.totalorder %s23, 0
      %p44 = por %p42, %p43
      %p45 = scmp.ne.s32.totalorder %s31, %s32
      %p46 = scmp.eq.s32.totalorder %s24, 1
      %p47 = por %p45, %p46
      %p49 = scmp.ne.s32.totalorder %s32, %s48
      %p50 = scmp.eq.s32.totalorder %s24, 0
      %p51 = por %p49, %p50
      %s52 = ssub.s32 %s18, %s25
      %p53 = scmp.eq.s32.totalorder %s52, 0
      %s55 = sadd.s32 %s54, 1
      %s56 = scalar_select %p53, %s54, %s55
      %p59 = pneg %p53
      %p60 = scmp.eq.s32.totalorder %s18, 1
      %p61 = por %p59, %p60
      %p62 = scmp.ne.s32.totalorder %s54, %s57
      %p63 = scmp.eq.s32.totalorder %s18, 0
      %p64 = por %p62, %p63
      %p65 = scmp.ne.s32.totalorder %s54, %s57
      %p66 = scmp.eq.s32.totalorder %s23, 1
      %p67 = por %p65, %p66
      %p68 = scmp.ne.s32.totalorder %s57, %s58
      %p69 = scmp.eq.s32.totalorder %s23, 0
      %p70 = por %p68, %p69
      %p71 = scmp.ne.s32.totalorder %s57, %s58
      %p72 = scmp.eq.s32.totalorder %s24, 1
      %p73 = por %p71, %p72
      %p75 = scmp.ne.s32.totalorder %s58, %s74
      %p76 = scmp.eq.s32.totalorder %s24, 0
      %p77 = por %p75, %p76
      %p78 = scmp.le.s32.totalorder 1, %s18
      %p79 = scmp.lt.s32.totalorder %s18, 3
      %p80 = pnand %p78, %p79
      %p81 = pneg %p80
      // Predicated region
      $region9: #{tpu_custom_call.1} parent=5 // pred_check
        _
      $region10: #{tpu_custom_call.1} parent=5 // pred_check_branch
        %83 = sbr.rel (%p80) target = $region12
      $region11: #{tpu_custom_call.1} parent=5 // pred_region
        %s84 = ssub.s32 %s18, 1
      $region12: #{tpu_custom_call.1} parent=5 // pred_fallthru
        _
      %p85 = scmp.lt.s32.totalorder %s18, 2
      // Predicated region
      $region13: #{tpu_custom_call.1} parent=5 // pred_check
        %p86 = pneg %p85
      $region14: #{tpu_custom_call.1} parent=5 // pred_check_branch
        %88 = sbr.rel (%p86) target = $region16
      $region15: #{tpu_custom_call.1} parent=5 // pred_region
        // Predicated region
        $region17: #{tpu_custom_call.1} parent=15 // pred_check
          %p89 = pneg %p38
        $region18: #{tpu_custom_call.1} parent=15 // pred_check_branch
          %91 = sbr.rel (%p89) target = $region20
        $region19: #{tpu_custom_call.1} parent=15 // pred_region
          %s92 = sand.u32 %s28, 1
          %s93 = scalar_lea.sflag [#allocation5], %s92
          %s94 = sand.u32 %s28, 1
          %s95 = smul.addr %s94, 32
          %s96 = scalar_lea.vmem [#allocation4], %s95
          %s98 = ssub.s32 512, 512
          %99 = vsyncadd %s93, %s98
          %s100 = smul.addr %s18, 4
          %s101 = smul.addr %s100, 128
          %s102 = scalar_lea.hbm %s1, %s101
          %s103 = sshll.u32 %s96, 4
          %s104 = int_to_ptr.vmem [resolvable:$true] %s103
          %109 = dma.hbm_to_vmem [thread:$0]  %s102, 512, %s104, %s93, 128, 128, 8
        $region20: #{tpu_custom_call.1} parent=15 // pred_fallthru
          _
      $region16: #{tpu_custom_call.1} parent=5 // pred_fallthru
        _
      %p110 = scmp.le.s32.totalorder 1, %s18
      %p111 = scmp.lt.s32.totalorder %s18, 3
      %p112 = pnand %p110, %p111
      %p113 = pneg %p112
      // Predicated region
      $region21: #{tpu_custom_call.1} parent=5 // pred_check
        _
      $region22: #{tpu_custom_call.1} parent=5 // pred_check_branch
        %115 = sbr.rel (%p112) target = $region24
      $region23: #{tpu_custom_call.1} parent=5 // pred_region
        %s116 = ssub.s32 %s18, 1
        %s117 = sand.u32 %s31, 1
        %s118 = scalar_lea.sflag [#allocation5], %s117
        %s119 = sand.u32 %s31, 1
        %s120 = smul.addr %s119, 32
        %s121 = scalar_lea.vmem [#allocation4], %s120
        // Predicated region
        $region25: #{tpu_custom_call.1} parent=23 // pred_check
          %p122 = pneg %p44
        $region26: #{tpu_custom_call.1} parent=23 // pred_check_branch
          %124 = sbr.rel (%p122) target = $region28
        $region27: #{tpu_custom_call.1} parent=23 // pred_region
          %125 = dma.done %s118, 512
        $region28: #{tpu_custom_call.1} parent=23 // pred_fallthru
          _
        %s126 = sand.u32 %s31, 1
        %s127 = scalar_lea.sflag [#allocation5], %s126
        %s128 = sand.u32 %s31, 1
        %s129 = smul.addr %s128, 32
        %s130 = scalar_lea.vmem [#allocation4], %s129
        %p131 = pneg %p44
        %p132 = pneg %p41
        %p133 = pneg %p70
        %p134 = pneg %p67
        %s135 = sand.u32 %s57, 1
        %s136 = scalar_lea.sflag [#allocation6], %s135
        %s137 = sand.u32 %s57, 1
        %s138 = smul.addr %s137, 8
        %s139 = scalar_lea.vmem [#allocation7], %s138
        %v140 = vld [vmem:[%s121] sm:$0xff]
        %v141 = vld [vmem:[%s121 + $0x8] sm:$0xff]
        %v142 = vld [vmem:[%s121 + $0x10] sm:$0xff]
        %v143 = vld [vmem:[%s121 + $0x18] sm:$0xff]
        %vm144 = vcmask 523264
        %v145 = vsel %vm144, %v140, 0.0
        %v146 = vsel %vm144, %v141, 0.0
        %v147 = vadd.f32 %v145, %v146
        %v148 = vsel %vm144, %v142, 0.0
        %v149 = vadd.f32 %v147, %v148
        %v150 = vsel %vm144, %v143, 0.0
        %v151 = vadd.f32 %v149, %v150
        %v152 = vrcp.pop 4.0
        %v153 = vmul.f32 %v151, %v152
        %v154 = vsel %vm144, %v140, -inf
        %v155 = vsel %vm144, %v141, -inf
        %v156 = vsel %vm144, %v142, -inf
        %v157 = vsel %vm144, %v143, -inf
        %v158 = vmax.f32 %v154, %v155
        %v159 = vmax.f32 %v156, %v157
        %v160 = vmax.f32 %v158, %v159
        %162 = vrot.lane.b32.xlu0 %v153, 9
        %v163 = vpop.permute.xlu0 %162
        %vm165 = vcmask 72704
        %v166 = vsel %vm165, 0.0, %v163
        %vm167 = vcmask 596992
        %v168 = vsel %vm167, %v166, 0.0
        %v170 = vrot.slane %v168, 7
        %vm172 = vcmask 1040384
        %v173 = vsel %vm172, 0.0, %v170
        %v174 = vsel %vm172, %v170, 0.0
        %176 = vrot.lane.b32.xlu0 %v160, 9
        %v177 = vpop.permute.xlu0 %176
        %v179 = vsel %vm165, 0.0, %v177
        %v180 = vsel %vm167, %v179, 0.0
        %v182 = vrot.slane %v180, 7
        %v184 = vsel %vm172, 0.0, %v182
        %v185 = vsel %vm172, %v182, 0.0
        %v186 = vlaneseq
        %v187 = vand.u32 %v186, 127
        %vm188 = vcmp.lt.s32.totalorder %v187, 0
        %v189 = vsub.s32 0, %v187
        %v190 = vsel %vm188, %v189, %v187
        %v191 = vshrl.u32 %v190, 3
        %v192 = vand.u32 %v190, 7
        %v193 = vsub.s32 0, %v192
        %v194 = vsel %vm188, %v193, %v192
        %vm195 = vcmp.ne.s32.totalorder %v194, 0
        %vm196 = vcmp.lt.s32.totalorder %v194, 0
        %vm197 = vmand %vm196, %vm195
        %v198 = vadd.s32 %v194, 8
        %v199 = vsel %vm197, %v198, %v194
        %v200 = vadd.s32 %v199, 4294967295
        %vm201 = vcmp.ge.s32.totalorder %v200, 0
        %vm202 = vcmp.lt.s32.totalorder %v200, 8
        %vm203 = vmand %vm201, %vm202
        %vm204 = vcmp.ge.s32.totalorder %v199, 0
        %vm205 = vcmp.lt.s32.totalorder %v199, 8
        %vm206 = vmand %vm204, %vm205
        %v207 = vadd.s32 %v199, 1
        %vm208 = vcmp.ge.s32.totalorder %v207, 0
        %vm209 = vcmp.lt.s32.totalorder %v207, 8
        %vm210 = vmand %vm208, %vm209
        %s211 = sld [smem:[#allocation3]]
        %v212 = vstv %s211
        %v213 = vmul.f32 %v212, %v173
        %v214 = vadd.f32 %v213, 0.0
        %s215 = sld [smem:[#allocation3 + $0x1b]]
        %v216 = vstv %s215
        %v217 = vmul.f32 %v216, %v184
        %v218 = vadd.f32 %v217, 0.0
        %s219 = sld [smem:[#allocation3 + $0x3]]
        %v220 = vstv %s219
        %v221 = vmul.f32 %v220, %v173
        %223 = vrot.lane.b32.xlu0 %v221, 120
        %v224 = vpop.permute.xlu0 %223
        %v226 = vadd.f32 %v214, %v224
        %s227 = sld [smem:[#allocation3 + $0x1e]]
        %v228 = vstv %s227
        %v229 = vmul.f32 %v228, %v184
        %231 = vrot.lane.b32.xlu0 %v229, 120
        %v232 = vpop.permute.xlu0 %231
        %v234 = vadd.f32 %v218, %v232
        %s235 = sld [smem:[#allocation3 + $0x6]]
        %v236 = vstv %s235
        %v237 = vmul.f32 %v236, %v173
        %239 = vrot.lane.b32.xlu0 %v237, 112
        %v240 = vpop.permute.xlu0 %239
        %v242 = vadd.f32 %v226, %v240
        %s243 = sld [smem:[#allocation3 + $0x21]]
        %v244 = vstv %s243
        %v245 = vmul.f32 %v244, %v184
        %247 = vrot.lane.b32.xlu0 %v245, 112
        %v248 = vpop.permute.xlu0 %247
        %v250 = vadd.f32 %v234, %v248
        %s251 = sld [smem:[#allocation3 + $0x9]]
        %v252 = vstv %s251
        %v253 = vmul.f32 %v252, %v173
        %v254 = vmul.f32 %v252, %v174
        %vm257 = vcmask 1046528
        %v258 = vrot.slane %v253, 1
        %v259 = vrot.slane %v254, 1
        %v260 = vsel %vm257, %v258, %v259
        %v262 = vadd.f32 %v242, %v260
        %s263 = sld [smem:[#allocation3 + $0x24]]
        %v264 = vstv %s263
        %v265 = vmul.f32 %v264, %v184
        %v266 = vmul.f32 %v264, %v185
        %v269 = vrot.slane %v265, 1
        %v270 = vrot.slane %v266, 1
        %v271 = vsel %vm257, %v269, %v270
        %v273 = vadd.f32 %v250, %v271
        %s274 = sld [smem:[#allocation3 + $0xc]]
        %v275 = vstv %s274
        %v276 = vmul.f32 %v275, %v173
        %v277 = vmul.f32 %v275, %v174
        %v280 = vrot.slane %v276, 1
        %v281 = vrot.slane %v277, 1
        %v282 = vsel %vm257, %v280, %v281
        %283 = vrot.lane.b32.xlu0 %v282, 120
        %v284 = vpop.permute.xlu0 %283
        %v286 = vadd.f32 %v262, %v284
        %s287 = sld [smem:[#allocation3 + $0x27]]
        %v288 = vstv %s287
        %v289 = vmul.f32 %v288, %v184
        %v290 = vmul.f32 %v288, %v185
        %v293 = vrot.slane %v289, 1
        %v294 = vrot.slane %v290, 1
        %v295 = vsel %vm257, %v293, %v294
        %296 = vrot.lane.b32.xlu0 %v295, 120
        %v297 = vpop.permute.xlu0 %296
        %v299 = vadd.f32 %v273, %v297
        %s300 = sld [smem:[#allocation3 + $0xf]]
        %v301 = vstv %s300
        %v302 = vmul.f32 %v301, %v173
        %v303 = vmul.f32 %v301, %v174
        %v306 = vrot.slane %v302, 1
        %v307 = vrot.slane %v303, 1
        %v308 = vsel %vm257, %v306, %v307
        %309 = vrot.lane.b32.xlu0 %v308, 112
        %v310 = vpop.permute.xlu0 %309
        %v312 = vadd.f32 %v286, %v310
        %s313 = sld [smem:[#allocation3 + $0x2a]]
        %v314 = vstv %s313
        %v315 = vmul.f32 %v314, %v184
        %v316 = vmul.f32 %v314, %v185
        %v319 = vrot.slane %v315, 1
        %v320 = vrot.slane %v316, 1
        %v321 = vsel %vm257, %v319, %v320
        %322 = vrot.lane.b32.xlu0 %v321, 112
        %v323 = vpop.permute.xlu0 %322
        %v325 = vadd.f32 %v299, %v323
        %s326 = sld [smem:[#allocation3 + $0x12]]
        %v327 = vstv %s326
        %v328 = vmul.f32 %v327, %v173
        %v329 = vmul.f32 %v327, %v174
        %vm332 = vcmask 1045504
        %v333 = vrot.slane %v328, 2
        %v334 = vrot.slane %v329, 2
        %v335 = vsel %vm332, %v333, %v334
        %v337 = vadd.f32 %v312, %v335
        %s338 = sld [smem:[#allocation3 + $0x2d]]
        %v339 = vstv %s338
        %v340 = vmul.f32 %v339, %v184
        %v341 = vmul.f32 %v339, %v185
        %v344 = vrot.slane %v340, 2
        %v345 = vrot.slane %v341, 2
        %v346 = vsel %vm332, %v344, %v345
        %v348 = vadd.f32 %v325, %v346
        %s349 = sld [smem:[#allocation3 + $0x15]]
        %v350 = vstv %s349
        %v351 = vmul.f32 %v350, %v173
        %v352 = vmul.f32 %v350, %v174
        %v355 = vrot.slane %v351, 2
        %v356 = vrot.slane %v352, 2
        %v357 = vsel %vm332, %v355, %v356
        %358 = vrot.lane.b32.xlu0 %v357, 120
        %v359 = vpop.permute.xlu0 %358
        %v361 = vadd.f32 %v337, %v359
        %s362 = sld [smem:[#allocation3 + $0x30]]
        %v363 = vstv %s362
        %v364 = vmul.f32 %v363, %v184
        %v365 = vmul.f32 %v363, %v185
        %v368 = vrot.slane %v364, 2
        %v369 = vrot.slane %v365, 2
        %v370 = vsel %vm332, %v368, %v369
        %371 = vrot.lane.b32.xlu0 %v370, 120
        %v372 = vpop.permute.xlu0 %371
        %v374 = vadd.f32 %v348, %v372
        %s375 = sld [smem:[#allocation3 + $0x18]]
        %v376 = vstv %s375
        %v377 = vmul.f32 %v376, %v173
        %v378 = vmul.f32 %v376, %v174
        %v381 = vrot.slane %v377, 2
        %v382 = vrot.slane %v378, 2
        %v383 = vsel %vm332, %v381, %v382
        %384 = vrot.lane.b32.xlu0 %v383, 112
        %v385 = vpop.permute.xlu0 %384
        %v387 = vadd.f32 %v361, %v385
        %s388 = sld [smem:[#allocation3 + $0x33]]
        %v389 = vstv %s388
        %v390 = vmul.f32 %v389, %v184
        %v391 = vmul.f32 %v389, %v185
        %v394 = vrot.slane %v390, 2
        %v395 = vrot.slane %v391, 2
        %v396 = vsel %vm332, %v394, %v395
        %397 = vrot.lane.b32.xlu0 %v396, 112
        %v398 = vpop.permute.xlu0 %397
        %v400 = vadd.f32 %v374, %v398
        %v401 = vadd.f32 %v387, %v400
        %v402 = vsel %vm203, 1, 0
        %vm403 = vcmp.eq.s32.totalorder %v402, 1
        %v404 = vsel %vm403, %v401, 0.0
        %v405 = vadd.f32 %v404, 0.0
        %s406 = sld [smem:[#allocation3 + $0x1]]
        %v407 = vstv %s406
        %v408 = vmul.f32 %v407, %v173
        %v409 = vadd.f32 %v408, 0.0
        %s410 = sld [smem:[#allocation3 + $0x1c]]
        %v411 = vstv %s410
        %v412 = vmul.f32 %v411, %v184
        %v413 = vadd.f32 %v412, 0.0
        %s414 = sld [smem:[#allocation3 + $0x4]]
        %v415 = vstv %s414
        %v416 = vmul.f32 %v415, %v173
        %418 = vrot.lane.b32.xlu0 %v416, 120
        %v419 = vpop.permute.xlu0 %418
        %v421 = vadd.f32 %v409, %v419
        %s422 = sld [smem:[#allocation3 + $0x1f]]
        %v423 = vstv %s422
        %v424 = vmul.f32 %v423, %v184
        %426 = vrot.lane.b32.xlu0 %v424, 120
        %v427 = vpop.permute.xlu0 %426
        %v429 = vadd.f32 %v413, %v427
        %s430 = sld [smem:[#allocation3 + $0x7]]
        %v431 = vstv %s430
        %v432 = vmul.f32 %v431, %v173
        %434 = vrot.lane.b32.xlu0 %v432, 112
        %v435 = vpop.permute.xlu0 %434
        %v437 = vadd.f32 %v421, %v435
        %s438 = sld [smem:[#allocation3 + $0x22]]
        %v439 = vstv %s438
        %v440 = vmul.f32 %v439, %v184
        %442 = vrot.lane.b32.xlu0 %v440, 112
        %v443 = vpop.permute.xlu0 %442
        %v445 = vadd.f32 %v429, %v443
        %s446 = sld [smem:[#allocation3 + $0xa]]
        %v447 = vstv %s446
        %v448 = vmul.f32 %v447, %v173
        %v449 = vmul.f32 %v447, %v174
        %v452 = vrot.slane %v448, 1
        %v453 = vrot.slane %v449, 1
        %v454 = vsel %vm257, %v452, %v453
        %v456 = vadd.f32 %v437, %v454
        %s457 = sld [smem:[#allocation3 + $0x25]]
        %v458 = vstv %s457
        %v459 = vmul.f32 %v458, %v184
        %v460 = vmul.f32 %v458, %v185
        %v463 = vrot.slane %v459, 1
        %v464 = vrot.slane %v460, 1
        %v465 = vsel %vm257, %v463, %v464
        %v467 = vadd.f32 %v445, %v465
        %s468 = sld [smem:[#allocation3 + $0xd]]
        %v469 = vstv %s468
        %v470 = vmul.f32 %v469, %v173
        %v471 = vmul.f32 %v469, %v174
        %v474 = vrot.slane %v470, 1
        %v475 = vrot.slane %v471, 1
        %v476 = vsel %vm257, %v474, %v475
        %477 = vrot.lane.b32.xlu0 %v476, 120
        %v478 = vpop.permute.xlu0 %477
        %v480 = vadd.f32 %v456, %v478
        %s481 = sld [smem:[#allocation3 + $0x28]]
        %v482 = vstv %s481
        %v483 = vmul.f32 %v482, %v184
        %v484 = vmul.f32 %v482, %v185
        %v487 = vrot.slane %v483, 1
        %v488 = vrot.slane %v484, 1
        %v489 = vsel %vm257, %v487, %v488
        %490 = vrot.lane.b32.xlu0 %v489, 120
        %v491 = vpop.permute.xlu0 %490
        %v493 = vadd.f32 %v467, %v491
        %s494 = sld [smem:[#allocation3 + $0x10]]
        %v495 = vstv %s494
        %v496 = vmul.f32 %v495, %v173
        %v497 = vmul.f32 %v495, %v174
        %v500 = vrot.slane %v496, 1
        %v501 = vrot.slane %v497, 1
        %v502 = vsel %vm257, %v500, %v501
        %503 = vrot.lane.b32.xlu0 %v502, 112
        %v504 = vpop.permute.xlu0 %503
        %v506 = vadd.f32 %v480, %v504
        %s507 = sld [smem:[#allocation3 + $0x2b]]
        %v508 = vstv %s507
        %v509 = vmul.f32 %v508, %v184
        %v510 = vmul.f32 %v508, %v185
        %v513 = vrot.slane %v509, 1
        %v514 = vrot.slane %v510, 1
        %v515 = vsel %vm257, %v513, %v514
        %516 = vrot.lane.b32.xlu0 %v515, 112
        %v517 = vpop.permute.xlu0 %516
        %v519 = vadd.f32 %v493, %v517
        %s520 = sld [smem:[#allocation3 + $0x13]]
        %v521 = vstv %s520
        %v522 = vmul.f32 %v521, %v173
        %v523 = vmul.f32 %v521, %v174
        %v526 = vrot.slane %v522, 2
        %v527 = vrot.slane %v523, 2
        %v528 = vsel %vm332, %v526, %v527
        %v530 = vadd.f32 %v506, %v528
        %s531 = sld [smem:[#allocation3 + $0x2e]]
        %v532 = vstv %s531
        %v533 = vmul.f32 %v532, %v184
        %v534 = vmul.f32 %v532, %v185
        %v537 = vrot.slane %v533, 2
        %v538 = vrot.slane %v534, 2
        %v539 = vsel %vm332, %v537, %v538
        %v541 = vadd.f32 %v519, %v539
        %s542 = sld [smem:[#allocation3 + $0x16]]
        %v543 = vstv %s542
        %v544 = vmul.f32 %v543, %v173
        %v545 = vmul.f32 %v543, %v174
        %v548 = vrot.slane %v544, 2
        %v549 = vrot.slane %v545, 2
        %v550 = vsel %vm332, %v548, %v549
        %551 = vrot.lane.b32.xlu0 %v550, 120
        %v552 = vpop.permute.xlu0 %551
        %v554 = vadd.f32 %v530, %v552
        %s555 = sld [smem:[#allocation3 + $0x31]]
        %v556 = vstv %s555
        %v557 = vmul.f32 %v556, %v184
        %v558 = vmul.f32 %v556, %v185
        %v561 = vrot.slane %v557, 2
        %v562 = vrot.slane %v558, 2
        %v563 = vsel %vm332, %v561, %v562
        %564 = vrot.lane.b32.xlu0 %v563, 120
        %v565 = vpop.permute.xlu0 %564
        %v567 = vadd.f32 %v541, %v565
        %s568 = sld [smem:[#allocation3 + $0x19]]
        %v569 = vstv %s568
        %v570 = vmul.f32 %v569, %v173
        %v571 = vmul.f32 %v569, %v174
        %v574 = vrot.slane %v570, 2
        %v575 = vrot.slane %v571, 2
        %v576 = vsel %vm332, %v574, %v575
        %577 = vrot.lane.b32.xlu0 %v576, 112
        %v578 = vpop.permute.xlu0 %577
        %v580 = vadd.f32 %v554, %v578
        %s581 = sld [smem:[#allocation3 + $0x34]]
        %v582 = vstv %s581
        %v583 = vmul.f32 %v582, %v184
        %v584 = vmul.f32 %v582, %v185
        %v587 = vrot.slane %v583, 2
        %v588 = vrot.slane %v584, 2
        %v589 = vsel %vm332, %v587, %v588
        %590 = vrot.lane.b32.xlu0 %v589, 112
        %v591 = vpop.permute.xlu0 %590
        %v593 = vadd.f32 %v567, %v591
        %v594 = vadd.f32 %v580, %v593
        %v595 = vsel %vm206, 1, 0
        %vm596 = vcmp.eq.s32.totalorder %v595, 1
        %598 = vrot.lane.b32.xlu0 %v594, 127
        %v599 = vpop.permute.xlu0 %598
        %v601 = vsel %vm596, %v599, 0.0
        %v602 = vadd.f32 %v405, %v601
        %s603 = sld [smem:[#allocation3 + $0x2]]
        %v604 = vstv %s603
        %v605 = vmul.f32 %v604, %v173
        %v606 = vadd.f32 %v605, 0.0
        %s607 = sld [smem:[#allocation3 + $0x1d]]
        %v608 = vstv %s607
        %v609 = vmul.f32 %v608, %v184
        %v610 = vadd.f32 %v609, 0.0
        %s611 = sld [smem:[#allocation3 + $0x5]]
        %v612 = vstv %s611
        %v613 = vmul.f32 %v612, %v173
        %615 = vrot.lane.b32.xlu0 %v613, 120
        %v616 = vpop.permute.xlu0 %615
        %v618 = vadd.f32 %v606, %v616
        %s619 = sld [smem:[#allocation3 + $0x20]]
        %v620 = vstv %s619
        %v621 = vmul.f32 %v620, %v184
        %623 = vrot.lane.b32.xlu0 %v621, 120
        %v624 = vpop.permute.xlu0 %623
        %v626 = vadd.f32 %v610, %v624
        %s627 = sld [smem:[#allocation3 + $0x8]]
        %v628 = vstv %s627
        %v629 = vmul.f32 %v628, %v173
        %631 = vrot.lane.b32.xlu0 %v629, 112
        %v632 = vpop.permute.xlu0 %631
        %v634 = vadd.f32 %v618, %v632
        %s635 = sld [smem:[#allocation3 + $0x23]]
        %v636 = vstv %s635
        %v637 = vmul.f32 %v636, %v184
        %639 = vrot.lane.b32.xlu0 %v637, 112
        %v640 = vpop.permute.xlu0 %639
        %v642 = vadd.f32 %v626, %v640
        %s643 = sld [smem:[#allocation3 + $0xb]]
        %v644 = vstv %s643
        %v645 = vmul.f32 %v644, %v173
        %v646 = vmul.f32 %v644, %v174
        %v649 = vrot.slane %v645, 1
        %v650 = vrot.slane %v646, 1
        %v651 = vsel %vm257, %v649, %v650
        %v653 = vadd.f32 %v634, %v651
        %s654 = sld [smem:[#allocation3 + $0x26]]
        %v655 = vstv %s654
        %v656 = vmul.f32 %v655, %v184
        %v657 = vmul.f32 %v655, %v185
        %v660 = vrot.slane %v656, 1
        %v661 = vrot.slane %v657, 1
        %v662 = vsel %vm257, %v660, %v661
        %v664 = vadd.f32 %v642, %v662
        %s665 = sld [smem:[#allocation3 + $0xe]]
        %v666 = vstv %s665
        %v667 = vmul.f32 %v666, %v173
        %v668 = vmul.f32 %v666, %v174
        %v671 = vrot.slane %v667, 1
        %v672 = vrot.slane %v668, 1
        %v673 = vsel %vm257, %v671, %v672
        %674 = vrot.lane.b32.xlu0 %v673, 120
        %v675 = vpop.permute.xlu0 %674
        %v677 = vadd.f32 %v653, %v675
        %s678 = sld [smem:[#allocation3 + $0x29]]
        %v679 = vstv %s678
        %v680 = vmul.f32 %v679, %v184
        %v681 = vmul.f32 %v679, %v185
        %v684 = vrot.slane %v680, 1
        %v685 = vrot.slane %v681, 1
        %v686 = vsel %vm257, %v684, %v685
        %687 = vrot.lane.b32.xlu0 %v686, 120
        %v688 = vpop.permute.xlu0 %687
        %v690 = vadd.f32 %v664, %v688
        %s691 = sld [smem:[#allocation3 + $0x11]]
        %v692 = vstv %s691
        %v693 = vmul.f32 %v692, %v173
        %v694 = vmul.f32 %v692, %v174
        %v697 = vrot.slane %v693, 1
        %v698 = vrot.slane %v694, 1
        %v699 = vsel %vm257, %v697, %v698
        %700 = vrot.lane.b32.xlu0 %v699, 112
        %v701 = vpop.permute.xlu0 %700
        %v703 = vadd.f32 %v677, %v701
        %s704 = sld [smem:[#allocation3 + $0x2c]]
        %v705 = vstv %s704
        %v706 = vmul.f32 %v705, %v184
        %v707 = vmul.f32 %v705, %v185
        %v710 = vrot.slane %v706, 1
        %v711 = vrot.slane %v707, 1
        %v712 = vsel %vm257, %v710, %v711
        %713 = vrot.lane.b32.xlu0 %v712, 112
        %v714 = vpop.permute.xlu0 %713
        %v716 = vadd.f32 %v690, %v714
        %s717 = sld [smem:[#allocation3 + $0x14]]
        %v718 = vstv %s717
        %v719 = vmul.f32 %v718, %v173
        %v720 = vmul.f32 %v718, %v174
        %v723 = vrot.slane %v719, 2
        %v724 = vrot.slane %v720, 2
        %v725 = vsel %vm332, %v723, %v724
        %v727 = vadd.f32 %v703, %v725
        %s728 = sld [smem:[#allocation3 + $0x2f]]
        %v729 = vstv %s728
        %v730 = vmul.f32 %v729, %v184
        %v731 = vmul.f32 %v729, %v185
        %v734 = vrot.slane %v730, 2
        %v735 = vrot.slane %v731, 2
        %v736 = vsel %vm332, %v734, %v735
        %v738 = vadd.f32 %v716, %v736
        %s739 = sld [smem:[#allocation3 + $0x17]]
        %v740 = vstv %s739
        %v741 = vmul.f32 %v740, %v173
        %v742 = vmul.f32 %v740, %v174
        %v745 = vrot.slane %v741, 2
        %v746 = vrot.slane %v742, 2
        %v747 = vsel %vm332, %v745, %v746
        %748 = vrot.lane.b32.xlu0 %v747, 120
        %v749 = vpop.permute.xlu0 %748
        %v751 = vadd.f32 %v727, %v749
        %s752 = sld [smem:[#allocation3 + $0x32]]
        %v753 = vstv %s752
        %v754 = vmul.f32 %v753, %v184
        %v755 = vmul.f32 %v753, %v185
        %v758 = vrot.slane %v754, 2
        %v759 = vrot.slane %v755, 2
        %v760 = vsel %vm332, %v758, %v759
        %761 = vrot.lane.b32.xlu0 %v760, 120
        %v762 = vpop.permute.xlu0 %761
        %v764 = vadd.f32 %v738, %v762
        %s765 = sld [smem:[#allocation3 + $0x1a]]
        %v766 = vstv %s765
        %v767 = vmul.f32 %v766, %v173
        %v768 = vmul.f32 %v766, %v174
        %v771 = vrot.slane %v767, 2
        %v772 = vrot.slane %v768, 2
        %v773 = vsel %vm332, %v771, %v772
        %774 = vrot.lane.b32.xlu0 %v773, 112
        %v775 = vpop.permute.xlu0 %774
        %v777 = vadd.f32 %v751, %v775
        %s778 = sld [smem:[#allocation3 + $0x35]]
        %v779 = vstv %s778
        %v780 = vmul.f32 %v779, %v184
        %v781 = vmul.f32 %v779, %v185
        %v784 = vrot.slane %v780, 2
        %v785 = vrot.slane %v781, 2
        %v786 = vsel %vm332, %v784, %v785
        %787 = vrot.lane.b32.xlu0 %v786, 112
        %v788 = vpop.permute.xlu0 %787
        %v790 = vadd.f32 %v764, %v788
        %v791 = vadd.f32 %v777, %v790
        %v792 = vsel %vm210, 1, 0
        %vm793 = vcmp.eq.s32.totalorder %v792, 1
        %795 = vrot.lane.b32.xlu0 %v791, 126
        %v796 = vpop.permute.xlu0 %795
        %v798 = vsel %vm793, %v796, 0.0
        %v799 = vadd.f32 %v602, %v798
        %v800 = vxor.u32 %v799, 2147483648
        %v801 = vmul.f32 %v800, 1.442695
        %v802 = vpow.pop %v801
        %v803 = vadd.f32 %v802, 1.0
        %v804 = vrcp.pop %v803
        %v805 = vmul.f32 1.0, %v804
        %806 = vst.msk [vmem:[%s139] sm:$0xff] %vm144, %v805
        %s807 = sand.u32 %s57, 1
        %s808 = scalar_lea.sflag [#allocation6], %s807
        %s809 = sand.u32 %s57, 1
        %s810 = smul.addr %s809, 8
        %s811 = scalar_lea.vmem [#allocation7], %s810
        // Predicated region
        $region29: #{tpu_custom_call.1} parent=23 // pred_check
          %p812 = pneg %p67
        $region30: #{tpu_custom_call.1} parent=23 // pred_check_branch
          %814 = sbr.rel (%p812) target = $region32
        $region31: #{tpu_custom_call.1} parent=23 // pred_region
          %s816 = ssub.s32 128, 128
          %817 = vsyncadd %s808, %s816
          %s818 = smul.addr %s23, 128
          %s819 = scalar_lea.hbm %s2, %s818
          %s821 = sshll.u32 %s811, 4
          %s822 = int_to_ptr.vmem [resolvable:$true] %s821
          %824 = dma.vmem_to_hbm [thread:$0]  %s822, 128, %s819, %s808
        $region32: #{tpu_custom_call.1} parent=23 // pred_fallthru
          _
      $region24: #{tpu_custom_call.1} parent=5 // pred_fallthru
        _
      %p825 = scmp.le.s32.totalorder 2, %s18
      // Predicated region
      $region33: #{tpu_custom_call.1} parent=5 // pred_check
        %p826 = pneg %p825
      $region34: #{tpu_custom_call.1} parent=5 // pred_check_branch
        %828 = sbr.rel (%p826) target = $region36
      $region35: #{tpu_custom_call.1} parent=5 // pred_region
        %s829 = ssub.s32 %s18, 2
        // Predicated region
        $region37: #{tpu_custom_call.1} parent=35 // pred_check
          %p830 = pneg %p73
        $region38: #{tpu_custom_call.1} parent=35 // pred_check_branch
          %832 = sbr.rel (%p830) target = $region40
        $region39: #{tpu_custom_call.1} parent=35 // pred_region
          %s833 = sand.u32 %s58, 1
          %s834 = scalar_lea.sflag [#allocation6], %s833
          %s835 = sand.u32 %s58, 1
          %s836 = smul.addr %s835, 8
          %s837 = scalar_lea.vmem [#allocation7], %s836
          %838 = dma.done %s834, 128
        $region40: #{tpu_custom_call.1} parent=35 // pred_fallthru
          _
      $region36: #{tpu_custom_call.1} parent=5 // pred_fallthru
        _
    $region6: #{tpu_custom_call.1} parent=1 // loop_footer
      %s22 = sadd.s32 1, %s18
    $region7: #{tpu_custom_call.1} parent=1 // loop_footer_branch
      %17 = sbr.rel target = $region3
    $region8: #{tpu_custom_call.1} parent=1 // loop_exit
      _
    %839 = vsyncpa [#allocation5], 1
    %s840 = scalar_lea.sflag [#allocation5], 1
    %841 = vsyncpa %s840, 1
    %842 = vsyncpa [#allocation6], 1
    %s843 = scalar_lea.sflag [#allocation6], 1
    %844 = vsyncpa %s843, 1

</llo_original>
